<compile_context>
chip_gen: v5e
topology: v5e:2x2
jax: 0.10.0
libtpu: 0.0.40
codegen_flags: <defaults>
</compile_context>

<pallas_src>
import jax
import jax.numpy as jnp
from jax import lax
from jax.experimental import pallas as pl
from jax.experimental.pallas import tpu as pltpu

EPS = 1e-3  # BatchNorm2d(eps=0.001)


def _se_conv_bn_kernel(x455_ref, w1t_ref, b1_ref, x452_ref, w2_ref,
                       gamma_ref, beta_ref, o_ref):
    # conv2d146 (1x1, with bias) in lane-major layout:
    #   w1_t: (C_se, C_mid) f32, x455: (C_se, 1) f32 -> se: (1, C_mid) f32.
    # Sublane reduce (axis=0) keeps the result lane-dense so the sigmoid uses
    # the EUP at full lane occupancy.
    se = jnp.sum(w1t_ref[...] * x455_ref[...], axis=0, keepdims=True)
    se = se + b1_ref[...]
    gate = jax.nn.sigmoid(se)                                    # (1, C_mid)

    # Fold the gate into the conv2d147 weight (algebraically identical to
    # gating x452): a lane-dense row-broadcast VPU scale of the weight tile.
    w2g = (w2_ref[...] * gate).astype(jnp.bfloat16)              # (blk, C_mid)

    # conv2d147 (1x1, no bias): (blk, C_mid) @ (C_mid, HW), f32 accumulation.
    y = jnp.dot(w2g, x452_ref[...], preferred_element_type=jnp.float32)

    # batchnorm2d87, training mode (fresh module): batch stats over N*H*W
    # (N=1), biased variance, affine.  Stats are per output channel == per
    # row, so each output-channel block is fully independent.
    mean = jnp.mean(y, axis=1, keepdims=True)
    var = jnp.mean(jnp.square(y - mean), axis=1, keepdims=True)
    y_hat = (y - mean) * lax.rsqrt(var + EPS)
    o_ref[...] = y_hat * gamma_ref[...] + beta_ref[...]
    # TODO(synk): training-mode BN also updates running_mean/running_var
    # (unbiased); those module side effects are not produced by this kernel.


def _num_cout_blocks(c_out: int) -> int:
    """2-way output-channel split only on 2-TensorCore (v7x-class) chips."""
    if c_out % 2 != 0 or (c_out // 2) % 8 != 0:
        return 1
    try:
        kind = jax.devices()[0].device_kind.lower()
    except Exception:
        return 1
    # v5e / v6e are single-TensorCore: a grid split would be pure serial
    # overhead (extra pipeline step + replicated-block revisits).
    return 2 if "7" in kind else 1


@jax.jit
def se_conv_bn(x455, x452, w1, b1, w2, gamma, beta):
    """x455: (1, C_se, 1, 1); x452: (1, C_mid, H, W) (float32, NCHW).
    w1: (C_mid, C_se, 1, 1) conv2d146 weight; b1: (C_mid,) its bias.
    w2: (C_out, C_mid, 1, 1) conv2d147 weight; gamma/beta: (C_out,) BN affine.
    Returns (1, C_out, H, W) float32, matching the PyTorch module forward."""
    n, c_se = x455.shape[0], x455.shape[1]
    n2, c_mid, h, w = x452.shape
    assert n == 1 and n2 == 1, "module's inputs imply batch size 1"
    c_out = w2.shape[0]
    hw = h * w

    num_blocks = _num_cout_blocks(c_out)
    blk = c_out // num_blocks

    # Layout plumbing: free NCHW views plus one tiny (constant-foldable)
    # weight transpose for w1; bf16 storage only for the heavy operands.
    x455_m = x455.reshape(c_se, 1).astype(jnp.float32)            # (C_se, 1)
    w1t_m = w1.reshape(c_mid, c_se).astype(jnp.float32).T         # (C_se, C_mid)
    b1_m = b1.reshape(1, c_mid).astype(jnp.float32)               # (1, C_mid)
    x452_m = x452.reshape(c_mid, hw).astype(jnp.bfloat16)         # (C_mid, HW)
    w2_m = w2.reshape(c_out, c_mid).astype(jnp.bfloat16)          # (C_out, C_mid)
    gamma_m = gamma.reshape(c_out, 1).astype(jnp.float32)
    beta_m = beta.reshape(c_out, 1).astype(jnp.float32)

    flops = (2 * c_se * c_mid            # conv2d146 (SE vector)
             + 2 * c_mid                 # bias + gate
             + 2 * c_out * c_mid         # fold gate into w2
             + 2 * c_out * c_mid * hw    # conv2d147
             + 8 * c_out * hw)           # batch-norm
    bytes_accessed = (x455_m.size * 4 + w1t_m.size * 4 + b1_m.size * 4
                      + x452_m.size * 2 + w2_m.size * 2
                      + (gamma_m.size + beta_m.size) * 4
                      + c_out * hw * 4)

    if num_blocks == 2:
        # Guarantee the split genuinely shards across the two TensorCores.
        dim_sem = (pltpu.CORE_PARALLEL,)
    else:
        dim_sem = ("arbitrary",)

    out = pl.pallas_call(
        _se_conv_bn_kernel,
        out_shape=jax.ShapeDtypeStruct((c_out, hw), jnp.float32),
        grid=(num_blocks,),
        in_specs=[
            pl.BlockSpec((c_se, 1), lambda i: (0, 0)),          # x455
            pl.BlockSpec((c_se, c_mid), lambda i: (0, 0)),      # w1^T
            pl.BlockSpec((1, c_mid), lambda i: (0, 0)),         # b1 row
            pl.BlockSpec((c_mid, hw), lambda i: (0, 0)),        # x452
            pl.BlockSpec((blk, c_mid), lambda i: (i, 0)),       # w2   (split)
            pl.BlockSpec((blk, 1), lambda i: (i, 0)),           # gamma (split)
            pl.BlockSpec((blk, 1), lambda i: (i, 0)),           # beta  (split)
        ],
        out_specs=pl.BlockSpec((blk, hw), lambda i: (i, 0)),
        compiler_params=pltpu.CompilerParams(
            dimension_semantics=dim_sem,
            vmem_limit_bytes=16 * 1024 * 1024),
        cost_estimate=pl.CostEstimate(
            flops=flops, transcendentals=c_mid + c_out,
            bytes_accessed=bytes_accessed),
    )(x455_m, w1t_m, b1_m, x452_m, w2_m, gamma_m, beta_m)

    # Channel-major (C_out, HW) reshapes straight back to NCHW — no transpose.
    return out.reshape(1, c_out, h, w)


def _reference(x455, x452, w1, b1, w2, gamma, beta, quantize):
    """Pure-JAX reference mirroring the PyTorch forward (training-mode BN).
    If quantize=True it mirrors the kernel's bf16 storage / rounding points."""
    c_mid = w1.shape[0]
    c_se = x455.shape[1]
    c_out = w2.shape[0]
    _, _, h, w = x452.shape
    hw = h * w
    w1m = w1.reshape(c_mid, c_se).astype(jnp.float32)
    w2m = w2.reshape(c_out, c_mid).astype(jnp.float32)
    x452m = x452.reshape(c_mid, hw).astype(jnp.float32)
    if quantize:
        w2m = w2m.astype(jnp.bfloat16).astype(jnp.float32)
        x452m = x452m.astype(jnp.bfloat16).astype(jnp.float32)
    se = x455.reshape(1, c_se).astype(jnp.float32) @ w1m.T + b1.reshape(1, c_mid)
    gate = jax.nn.sigmoid(se)                     # (1, C_mid)
    w2g = w2m * gate
    if quantize:
        w2g = w2g.astype(jnp.bfloat16).astype(jnp.float32)
    y = w2g @ x452m                               # (C_out, HW)
    mean = y.mean(axis=1, keepdims=True)
    var = jnp.square(y - mean).mean(axis=1, keepdims=True)
    y_hat = (y - mean) * lax.rsqrt(var + EPS)
    out = y_hat * gamma.reshape(c_out, 1) + beta.reshape(c_out, 1)
    return out.reshape(1, c_out, h, w)


if __name__ == "__main__":
    # Small shapes consistent with the module's structure
    # (original: C_se=76, C_mid=1824, C_out=304, H=W=7, N=1).
    N, C_SE, C_MID, C_OUT, H, W = 1, 8, 64, 32, 7, 7

    key = jax.random.PRNGKey(0)
    k1, k2, k3, k4, k5, k6, k7 = jax.random.split(key, 7)

    x455 = jax.random.normal(k1, (N, C_SE, 1, 1), jnp.float32)
    x452 = jax.random.normal(k2, (N, C_MID, H, W), jnp.float32)

    # Synthetic parameters in PyTorch conv/BN layouts.
    w1 = jax.random.normal(k3, (C_MID, C_SE, 1, 1), jnp.float32) * 0.1   # conv2d146.weight
    b1 = jax.random.normal(k4, (C_MID,), jnp.float32) * 0.1              # conv2d146.bias
    w2 = jax.random.normal(k5, (C_OUT, C_MID, 1, 1), jnp.float32) * 0.1  # conv2d147.weight
    gamma = 1.0 + 0.1 * jax.random.normal(k6, (C_OUT,), jnp.float32)     # BN weight
    beta = 0.1 * jax.random.normal(k7, (C_OUT,), jnp.float32)            # BN bias

    out = jax.block_until_ready(se_conv_bn(x455, x452, w1, b1, w2, gamma, beta))
    assert out.shape == (N, C_OUT, H, W)

    # Tight check vs a reference that mirrors the kernel's bf16 rounding points.
    ref_q = _reference(x455, x452, w1, b1, w2, gamma, beta, quantize=True)
    err_q = float(jnp.max(jnp.abs(out - ref_q)))
    assert jnp.allclose(out, ref_q, rtol=2e-3, atol=2e-3), err_q

    # Loose check vs the exact f32 PyTorch-module math (bf16 storage noise).
    ref_f = _reference(x455, x452, w1, b1, w2, gamma, beta, quantize=False)
    err_f = float(jnp.max(jnp.abs(out - ref_f)))
    assert jnp.allclose(out, ref_f, rtol=5e-2, atol=5e-2), err_f

    print("KERNEL_OK")
</pallas_src>

<mosaic_0001>
module attributes {stable_mosaic.version = 11 : i64} {
  func.func @_se_conv_bn_kernel(%arg0: i32, %arg1: memref<8x1xf32, #tpu.memory_space<vmem>>, %arg2: memref<8x64xf32, #tpu.memory_space<vmem>>, %arg3: memref<1x64xf32, #tpu.memory_space<vmem>>, %arg4: memref<64x49xbf16, #tpu.memory_space<vmem>>, %arg5: memref<32x64xbf16, #tpu.memory_space<vmem>>, %arg6: memref<32x1xf32, #tpu.memory_space<vmem>>, %arg7: memref<32x1xf32, #tpu.memory_space<vmem>>, %arg8: memref<32x49xf32, #tpu.memory_space<vmem>>) attributes {dimension_semantics = [#tpu.dimension_semantics<arbitrary>], iteration_bounds = array<i64: 1>, scalar_prefetch = 0 : i64, scratch_operands = 0 : i64, tpu.core_type = #tpu.core_type<tc>, window_params = [{pipeline_mode = #tpu.pipeline_mode<synchronous>, transform_indices = @transform_0, window_bounds = array<i64: 8, 1>}, {pipeline_mode = #tpu.pipeline_mode<synchronous>, transform_indices = @transform_1, window_bounds = array<i64: 8, 64>}, {pipeline_mode = #tpu.pipeline_mode<synchronous>, transform_indices = @transform_2, window_bounds = array<i64: 1, 64>}, {pipeline_mode = #tpu.pipeline_mode<synchronous>, transform_indices = @transform_3, window_bounds = array<i64: 64, 49>}, {transform_indices = @transform_4, window_bounds = array<i64: 32, 64>}, {transform_indices = @transform_5, window_bounds = array<i64: 32, 1>}, {transform_indices = @transform_6, window_bounds = array<i64: 32, 1>}, {transform_indices = @transform_7, window_bounds = array<i64: 32, 49>}]} {
    %c0 = arith.constant 0 : index
    %c0_0 = arith.constant 0 : index
    %0 = vector.load %arg2[%c0, %c0_0] : memref<8x64xf32, #tpu.memory_space<vmem>>, vector<8x64xf32>
    %c0_1 = arith.constant 0 : index
    %c0_2 = arith.constant 0 : index
    %1 = vector.load %arg1[%c0_1, %c0_2] : memref<8x1xf32, #tpu.memory_space<vmem>>, vector<8x1xf32>
    %2 = vector.broadcast %1 : vector<8x1xf32> to vector<8x64xf32>
    %3 = arith.mulf %0, %2 : vector<8x64xf32>
    %cst = arith.constant dense<0.000000e+00> : vector<64xf32>
    %4 = vector.multi_reduction <add>, %3, %cst [0] : vector<8x64xf32> to vector<64xf32>
    %5 = vector.shape_cast %4 : vector<64xf32> to vector<1x64xf32>
    %c0_3 = arith.constant 0 : index
    %c0_4 = arith.constant 0 : index
    %6 = vector.load %arg3[%c0_3, %c0_4] : memref<1x64xf32, #tpu.memory_space<vmem>>, vector<1x64xf32>
    %7 = arith.addf %5, %6 : vector<1x64xf32>
    %8 = arith.negf %7 : vector<1x64xf32>
    %9 = math.exp %8 : vector<1x64xf32>
    %cst_5 = arith.constant 1.000000e+00 : f32
    %10 = vector.broadcast %cst_5 : f32 to vector<1x64xf32>
    %11 = arith.addf %10, %9 : vector<1x64xf32>
    %12 = arith.divf %10, %11 : vector<1x64xf32>
    %c0_6 = arith.constant 0 : index
    %c0_7 = arith.constant 0 : index
    %13 = vector.load %arg5[%c0_6, %c0_7] : memref<32x64xbf16, #tpu.memory_space<vmem>>, vector<32x64xbf16>
    %14 = arith.extf %13 : vector<32x64xbf16> to vector<32x64xf32>
    %15 = vector.broadcast %12 : vector<1x64xf32> to vector<32x64xf32>
    %16 = arith.mulf %14, %15 : vector<32x64xf32>
    %17 = arith.truncf %16 : vector<32x64xf32> to vector<32x64xbf16>
    %c0_8 = arith.constant 0 : index
    %c0_9 = arith.constant 0 : index
    %18 = vector.load %arg4[%c0_8, %c0_9] : memref<64x49xbf16, #tpu.memory_space<vmem>>, vector<64x49xbf16>
    %cst_10 = arith.constant dense<0.000000e+00> : vector<32x49xf32>
    %19 = tpu.matmul %17, %18, %cst_10 {dimension_numbers = #tpu.dot_dimension_numbers<[1], [0], [0], [1], [0, 0, 1, 1], [], []>} : vector<32x64xbf16>, vector<64x49xbf16>, vector<32x49xf32> -> vector<32x49xf32>
    %cst_11 = arith.constant dense<0.000000e+00> : vector<32xf32>
    %20 = vector.multi_reduction <add>, %19, %cst_11 [1] : vector<32x49xf32> to vector<32xf32>
    %21 = vector.shape_cast %20 : vector<32xf32> to vector<32x1xf32>
    %cst_12 = arith.constant 4.900000e+01 : f32
    %22 = vector.broadcast %cst_12 : f32 to vector<32x1xf32>
    %23 = arith.divf %21, %22 : vector<32x1xf32>
    %24 = vector.broadcast %23 : vector<32x1xf32> to vector<32x49xf32>
    %25 = arith.subf %19, %24 : vector<32x49xf32>
    %26 = arith.mulf %25, %25 : vector<32x49xf32>
    %cst_13 = arith.constant dense<0.000000e+00> : vector<32xf32>
    %27 = vector.multi_reduction <add>, %26, %cst_13 [1] : vector<32x49xf32> to vector<32xf32>
    %28 = vector.shape_cast %27 : vector<32xf32> to vector<32x1xf32>
    %cst_14 = arith.constant 4.900000e+01 : f32
    %29 = vector.broadcast %cst_14 : f32 to vector<32x1xf32>
    %30 = arith.divf %28, %29 : vector<32x1xf32>
    %31 = vector.broadcast %23 : vector<32x1xf32> to vector<32x49xf32>
    %32 = arith.subf %19, %31 : vector<32x49xf32>
    %cst_15 = arith.constant 1.000000e-03 : f32
    %33 = vector.broadcast %cst_15 : f32 to vector<32x1xf32>
    %34 = arith.addf %30, %33 : vector<32x1xf32>
    %35 = math.rsqrt %34 : vector<32x1xf32>
    %36 = vector.broadcast %35 : vector<32x1xf32> to vector<32x49xf32>
    %37 = arith.mulf %32, %36 : vector<32x49xf32>
    %c0_16 = arith.constant 0 : index
    %c0_17 = arith.constant 0 : index
    %38 = vector.load %arg6[%c0_16, %c0_17] : memref<32x1xf32, #tpu.memory_space<vmem>>, vector<32x1xf32>
    %39 = vector.broadcast %38 : vector<32x1xf32> to vector<32x49xf32>
    %40 = arith.mulf %37, %39 : vector<32x49xf32>
    %c0_18 = arith.constant 0 : index
    %c0_19 = arith.constant 0 : index
    %41 = vector.load %arg7[%c0_18, %c0_19] : memref<32x1xf32, #tpu.memory_space<vmem>>, vector<32x1xf32>
    %42 = vector.broadcast %41 : vector<32x1xf32> to vector<32x49xf32>
    %43 = arith.addf %40, %42 : vector<32x49xf32>
    %c0_20 = arith.constant 0 : index
    %c0_21 = arith.constant 0 : index
    %44 = vector.load %arg8[%c0_20, %c0_21] : memref<32x49xf32, #tpu.memory_space<vmem>>, vector<32x49xf32>
    tpu.vector_store %arg8[%c0_20, %c0_21], %43 {strides = array<i32>} : memref<32x49xf32, #tpu.memory_space<vmem>>, vector<32x49xf32>,
    return
  }
  func.func @transform_0(%arg0: i32) -> (i32, i32) {
    %c0_i32 = arith.constant 0 : i32
    %c0_i32_0 = arith.constant 0 : i32
    %c0_i32_1 = arith.constant 0 : i32
    return %c0_i32, %c0_i32_0 : i32, i32
  }
  func.func @transform_1(%arg0: i32) -> (i32, i32) {
    %c0_i32 = arith.constant 0 : i32
    %c0_i32_0 = arith.constant 0 : i32
    %c0_i32_1 = arith.constant 0 : i32
    return %c0_i32, %c0_i32_0 : i32, i32
  }
  func.func @transform_2(%arg0: i32) -> (i32, i32) {
    %c0_i32 = arith.constant 0 : i32
    %c0_i32_0 = arith.constant 0 : i32
    %c0_i32_1 = arith.constant 0 : i32
    return %c0_i32, %c0_i32_0 : i32, i32
  }
  func.func @transform_3(%arg0: i32) -> (i32, i32) {
    %c0_i32 = arith.constant 0 : i32
    %c0_i32_0 = arith.constant 0 : i32
    %c0_i32_1 = arith.constant 0 : i32
    return %c0_i32, %c0_i32_0 : i32, i32
  }
  func.func @transform_4(%arg0: i32) -> (i32, i32) {
    %c0_i32 = arith.constant 0 : i32
    %c0_i32_0 = arith.constant 0 : i32
    return %arg0, %c0_i32 : i32, i32
  }
  func.func @transform_5(%arg0: i32) -> (i32, i32) {
    %c0_i32 = arith.constant 0 : i32
    %c0_i32_0 = arith.constant 0 : i32
    return %arg0, %c0_i32 : i32, i32
  }
  func.func @transform_6(%arg0: i32) -> (i32, i32) {
    %c0_i32 = arith.constant 0 : i32
    %c0_i32_0 = arith.constant 0 : i32
    return %arg0, %c0_i32 : i32, i32
  }
  func.func @transform_7(%arg0: i32) -> (i32, i32) {
    %c0_i32 = arith.constant 0 : i32
    %c0_i32_0 = arith.constant 0 : i32
    return %arg0, %c0_i32 : i32, i32
  }
}

</mosaic_0001>

<llo_original>
// kernel: se_conv_bn.1
$region0: #{se_conv_bn.1}
  #allocation0 [shape = 'u32[]', space=smem, size = 0x4, offset = 0x4, fixed_abs, tag = 'smem constant byte address 0x4 - core index']
  #allocation1 [shape = 'u32[72,128]{1,0:T(1,128)}', space=vmem, size = 0x9000, scoped, tag = 'internal scratch']
  %s0 = inlined_call_operand.vmem [shape: f32[8,1], index: 0, kind: input, shape index: {}]
  %s1 = inlined_call_operand.vmem [shape: f32[8,64], index: 1, kind: input, shape index: {}]
  %s2 = inlined_call_operand.vmem [shape: f32[1,64], index: 2, kind: input, shape index: {}]
  %s3 = inlined_call_operand.vmem [shape: bf16[64,49], index: 3, kind: input, shape index: {}]
  %s4 = inlined_call_operand.vmem [shape: bf16[32,64], index: 4, kind: input, shape index: {}]
  %s5 = inlined_call_operand.vmem [shape: f32[32,1], index: 5, kind: input, shape index: {}]
  %s6 = inlined_call_operand.vmem [shape: f32[32,1], index: 6, kind: input, shape index: {}]
  %s7 = inlined_call_operand.vmem [shape: f32[32,49], index: 7, kind: output, shape index: {}]
  %s8 = sld [smem:[#allocation0]]
  $region38: #{se_conv_bn.1} parent=0
    _
  %s10 = ssub.s32 1, %s8
  %s11 = scalar_select 0, %s10, %s8
  // Predicated region
  $region2: #{se_conv_bn.1} parent=0 // pred_check
    _
  $region3: #{se_conv_bn.1} parent=0 // pred_check_branch
    %13 = sbr.rel (0) target = $region5
  $region4: #{se_conv_bn.1} parent=0 // pred_region
    _
  $region5: #{se_conv_bn.1} parent=0 // pred_fallthru
    _
  // Predicated region
  $region6: #{se_conv_bn.1} parent=0 // pred_check
    _
  $region7: #{se_conv_bn.1} parent=0 // pred_check_branch
    %15 = sbr.rel (0) target = $region9
  $region8: #{se_conv_bn.1} parent=0 // pred_region
    _
  $region9: #{se_conv_bn.1} parent=0 // pred_fallthru
    _
  // Predicated region
  $region10: #{se_conv_bn.1} parent=0 // pred_check
    _
  $region11: #{se_conv_bn.1} parent=0 // pred_check_branch
    %17 = sbr.rel (0) target = $region13
  $region12: #{se_conv_bn.1} parent=0 // pred_region
    _
  $region13: #{se_conv_bn.1} parent=0 // pred_fallthru
    _
  // Predicated region
  $region14: #{se_conv_bn.1} parent=0 // pred_check
    _
  $region15: #{se_conv_bn.1} parent=0 // pred_check_branch
    %19 = sbr.rel (0) target = $region17
  $region16: #{se_conv_bn.1} parent=0 // pred_region
    _
  $region17: #{se_conv_bn.1} parent=0 // pred_fallthru
    _
  // Predicated region
  $region18: #{se_conv_bn.1} parent=0 // pred_check
    _
  $region19: #{se_conv_bn.1} parent=0 // pred_check_branch
    %21 = sbr.rel (0) target = $region21
  $region20: #{se_conv_bn.1} parent=0 // pred_region
    _
  $region21: #{se_conv_bn.1} parent=0 // pred_fallthru
    _
  // Predicated region
  $region22: #{se_conv_bn.1} parent=0 // pred_check
    _
  $region23: #{se_conv_bn.1} parent=0 // pred_check_branch
    %23 = sbr.rel (0) target = $region25
  $region24: #{se_conv_bn.1} parent=0 // pred_region
    _
  $region25: #{se_conv_bn.1} parent=0 // pred_fallthru
    _
  // Predicated region
  $region26: #{se_conv_bn.1} parent=0 // pred_check
    _
  $region27: #{se_conv_bn.1} parent=0 // pred_check_branch
    %25 = sbr.rel (0) target = $region29
  $region28: #{se_conv_bn.1} parent=0 // pred_region
    _
  $region29: #{se_conv_bn.1} parent=0 // pred_fallthru
    _
  %v27 = vld [vmem:[%s1] sm:$0xff]
  %v28 = vld [vmem:[%s0] sm:$0xff]
  %30 = vset.pattern.permute.xlu0 0
  %31 = vperm.xlu0 %30, %v28
  %v32 = vpop.permute.xlu0 %31
  %v34 = vmul.f32 %v27, %v32
  %vm35 = vcmask 523264
  %v36 = vsel %vm35, %v34, 0.0
  %v37 = vrot.slane %v36, 4
  %v38 = vadd.f32 %v36, %v37
  %v39 = vrot.slane %v38, 2
  %v40 = vadd.f32 %v38, %v39
  %v41 = vrot.slane %v40, 1
  %v42 = vadd.f32 %v40, %v41
  %v43 = vld [vmem:[%s2] sm:$0x1]
  %v44 = vadd.f32 %v42, %v43
  %v45 = vxor.u32 %v44, 2147483648
  %v46 = vmul.f32 %v45, 1.442695
  %v47 = vpow.pop %v46
  %v48 = vadd.f32 %v47, 1.0
  %v49 = vrcp.pop %v48
  %v50 = vmul.f32 %v48, %v49
  %v51 = vsub.f32 1.0, %v50
  %v52 = vmul.f32 %v49, %v51
  %v53 = vadd.f32 %v49, %v52
  %vm54 = vweird.f32 %v48
  %vm55 = vweird.f32 %v49
  %vm56 = vmor %vm54, %vm55
  %v57 = vsel %vm56, %v49, %v53
  %v58 = vand.u32 2147483647, %v48
  %vm59 = vcmp.eq.f32.partialorder %v58, 8.507059e+37
  %v60 = vand.u32 %v48, 2147483648
  %v61 = vor.u32 1.1754944e-38, %v60
  %v62 = vsel %vm59, %v61, %v57
  %v63 = vmul.f32 1.0, %v62
  %v64 = vld [vmem:[%s4] sm:$0xf]
  %v65 = vld [vmem:[%s4 + $0x4] sm:$0xf]
  %v66 = vld [vmem:[%s4 + $0x8] sm:$0xf]
  %v67 = vld [vmem:[%s4 + $0xc] sm:$0xf]
  %v68 = vunpack.c.l.bf16 %v64
  %v69 = vunpack.c.l.bf16 %v65
  %v70 = vunpack.c.l.bf16 %v66
  %v71 = vunpack.c.l.bf16 %v67
  %v72 = vperm.slane %v63, 0
  %v73 = vmul.f32 %v68, %v72
  %v74 = vmul.f32 %v69, %v72
  %v75 = vmul.f32 %v70, %v72
  %v76 = vmul.f32 %v71, %v72
  %v77 = vpack.c.bf16 %v74, %v73
  %v78 = vpack.c.bf16 %v76, %v75
  %v79 = vld [vmem:[%s3] sm:$0xf]
  %v80 = vld [vmem:[%s3 + $0x4] sm:$0xf]
  %v81 = vld [vmem:[%s3 + $0x8] sm:$0xf]
  %v82 = vld [vmem:[%s3 + $0xc] sm:$0xf]
  %v83 = vld [vmem:[%s3 + $0x10] sm:$0xf]
  %v84 = vld [vmem:[%s3 + $0x14] sm:$0xf]
  %v85 = vld [vmem:[%s3 + $0x18] sm:$0xf]
  %v86 = vld [vmem:[%s3 + $0x1c] sm:$0xf]
  %v95 = vunpack.c.l.b16 %v79
  %v96 = vunpack.c.l.b16 %v80
  %v97 = vunpack.c.l.b16 %v81
  %v98 = vunpack.c.l.b16 %v82
  %v99 = vunpack.c.l.b16 %v83
  %v100 = vunpack.c.l.b16 %v84
  %v101 = vunpack.c.l.b16 %v85
  %v102 = vunpack.c.l.b16 %v86
  %v103 = vpack.c.b16 %v96, %v95
  %v104 = vpack.c.b16 %v98, %v97
  %v105 = vpack.c.b16 %v100, %v99
  %v106 = vpack.c.b16 %v102, %v101
  %v112 = vsel %vm35, %v77, 0
  %v115 = vsel %vm35, %v78, 0
  %117 = vmatpush.bf16.msra.mxu0 0
  %118 = vmatpush.bf16.msra.mxu0 0
  %119 = vmatpush.bf16.msra.mxu0 0
  %120 = vmatpush.bf16.msra.mxu0 0
  %121 = vmatpush.bf16.msra.mxu0 %v106
  %122 = vmatpush.bf16.msra.mxu0 %v105
  %123 = vmatpush.bf16.msra.mxu0 %v104
  %124 = vmatpush.bf16.msra.mxu0 %v103
  %125 = vmatmul.bf16.gmra.mxu0 %v112
  %v126 = vpop.f32.mrf.mxu0
  %v127 = vadd.f32 0.0, %v126
  %v128 = vpop.f32.mrf.mxu0
  %v129 = vadd.f32 0.0, %v128
  %130 = vmatmul.bf16.gmra.mxu0 %v115
  %v131 = vpop.f32.mrf.mxu0
  %v132 = vadd.f32 0.0, %v131
  %v133 = vpop.f32.mrf.mxu0
  %v134 = vadd.f32 0.0, %v133
  %135 = vdwg.mxu0
  %vm136 = vcmask 400384
  %v137 = vsel %vm136, %v127, 0.0
  %138 = vadd.xlane.f32.xlu0 %v137
  %v139 = vpop.xlane.xlu0 %138
  %v140 = vsel %vm136, %v129, 0.0
  %141 = vadd.xlane.f32.xlu0 %v140
  %v142 = vpop.xlane.xlu0 %141
  %v143 = vsel %vm136, %v132, 0.0
  %144 = vadd.xlane.f32.xlu0 %v143
  %v145 = vpop.xlane.xlu0 %144
  %v146 = vsel %vm136, %v134, 0.0
  %147 = vadd.xlane.f32.xlu0 %v146
  %v148 = vpop.xlane.xlu0 %147
  %v149 = vrcp.pop 49.0
  %v150 = vmul.f32 49.0, %v149
  %v151 = vsub.f32 1.0, %v150
  %v152 = vmul.f32 %v149, %v151
  %v153 = vadd.f32 %v149, %v152
  %vm154 = vweird.f32 %v149
  %v155 = vsel %vm154, %v149, %v153
  %v156 = vmul.f32 %v139, %v155
  %v157 = vmul.f32 %v142, %v155
  %v158 = vmul.f32 %v145, %v155
  %v159 = vmul.f32 %v148, %v155
  %v160 = vsub.f32 %v127, %v156
  %v161 = vsub.f32 %v129, %v157
  %v162 = vsub.f32 %v132, %v158
  %v163 = vsub.f32 %v134, %v159
  %v164 = vmul.f32 %v160, %v160
  %v165 = vmul.f32 %v161, %v161
  %v166 = vmul.f32 %v162, %v162
  %v167 = vmul.f32 %v163, %v163
  %v168 = vsel %vm136, %v164, 0.0
  %169 = vadd.xlane.f32.xlu0 %v168
  %v170 = vpop.xlane.xlu0 %169
  %v171 = vsel %vm136, %v165, 0.0
  %172 = vadd.xlane.f32.xlu0 %v171
  %v173 = vpop.xlane.xlu0 %172
  %v174 = vsel %vm136, %v166, 0.0
  %175 = vadd.xlane.f32.xlu0 %v174
  %v176 = vpop.xlane.xlu0 %175
  %v177 = vsel %vm136, %v167, 0.0
  %178 = vadd.xlane.f32.xlu0 %v177
  %v179 = vpop.xlane.xlu0 %178
  %v180 = vmul.f32 %v170, %v155
  %v181 = vmul.f32 %v173, %v155
  %v182 = vmul.f32 %v176, %v155
  %v183 = vmul.f32 %v179, %v155
  %v184 = vadd.f32 %v180, 0.001
  %v185 = vadd.f32 %v181, 0.001
  %v186 = vadd.f32 %v182, 0.001
  %v187 = vadd.f32 %v183, 0.001
  %v188 = vrsqrt.pop %v184
  %v189 = vmul.f32 %v188, %v184
  %v190 = vmul.f32 %v189, %v188
  %v191 = vmul.f32 0.5, %v190
  %v192 = vsub.f32 1.5, %v191
  %v193 = vmul.f32 %v188, %v192
  %vm194 = vweird.f32 %v184
  %vm195 = vweird.f32 %v188
  %vm196 = vmor %vm194, %vm195
  %v197 = vsel %vm196, %v188, %v193
  %v198 = vrsqrt.pop %v185
  %v199 = vmul.f32 %v198, %v185
  %v200 = vmul.f32 %v199, %v198
  %v201 = vmul.f32 0.5, %v200
  %v202 = vsub.f32 1.5, %v201
  %v203 = vmul.f32 %v198, %v202
  %vm204 = vweird.f32 %v185
  %vm205 = vweird.f32 %v198
  %vm206 = vmor %vm204, %vm205
  %v207 = vsel %vm206, %v198, %v203
  %v208 = vrsqrt.pop %v186
  %v209 = vmul.f32 %v208, %v186
  %v210 = vmul.f32 %v209, %v208
  %v211 = vmul.f32 0.5, %v210
  %v212 = vsub.f32 1.5, %v211
  %v213 = vmul.f32 %v208, %v212
  %vm214 = vweird.f32 %v186
  %vm215 = vweird.f32 %v208
  %vm216 = vmor %vm214, %vm215
  %v217 = vsel %vm216, %v208, %v213
  %v218 = vrsqrt.pop %v187
  %v219 = vmul.f32 %v218, %v187
  %v220 = vmul.f32 %v219, %v218
  %v221 = vmul.f32 0.5, %v220
  %v222 = vsub.f32 1.5, %v221
  %v223 = vmul.f32 %v218, %v222
  %vm224 = vweird.f32 %v187
  %vm225 = vweird.f32 %v218
  %vm226 = vmor %vm224, %vm225
  %v227 = vsel %vm226, %v218, %v223
  %v228 = vmul.f32 %v160, %v197
  %v229 = vmul.f32 %v161, %v207
  %v230 = vmul.f32 %v162, %v217
  %v231 = vmul.f32 %v163, %v227
  %v232 = vld [vmem:[%s5] sm:$0xff]
  %v233 = vld [vmem:[%s5 + $0x8] sm:$0xff]
  %v234 = vld [vmem:[%s5 + $0x10] sm:$0xff]
  %v235 = vld [vmem:[%s5 + $0x18] sm:$0xff]
  %237 = vset.pattern.permute.xlu0 0
  %238 = vperm.xlu0 %237, %v232
  %v239 = vpop.permute.xlu0 %238
  %242 = vset.pattern.permute.xlu0 0
  %243 = vperm.xlu0 %242, %v233
  %v244 = vpop.permute.xlu0 %243
  %247 = vset.pattern.permute.xlu0 0
  %248 = vperm.xlu0 %247, %v234
  %v249 = vpop.permute.xlu0 %248
  %252 = vset.pattern.permute.xlu0 0
  %253 = vperm.xlu0 %252, %v235
  %v254 = vpop.permute.xlu0 %253
  %v256 = vmul.f32 %v228, %v239
  %v257 = vmul.f32 %v229, %v244
  %v258 = vmul.f32 %v230, %v249
  %v259 = vmul.f32 %v231, %v254
  %v260 = vld [vmem:[%s6] sm:$0xff]
  %v261 = vld [vmem:[%s6 + $0x8] sm:$0xff]
  %v262 = vld [vmem:[%s6 + $0x10] sm:$0xff]
  %v263 = vld [vmem:[%s6 + $0x18] sm:$0xff]
  %265 = vset.pattern.permute.xlu0 0
  %266 = vperm.xlu0 %265, %v260
  %v267 = vpop.permute.xlu0 %266
  %270 = vset.pattern.permute.xlu0 0
  %271 = vperm.xlu0 %270, %v261
  %v272 = vpop.permute.xlu0 %271
  %275 = vset.pattern.permute.xlu0 0
  %276 = vperm.xlu0 %275, %v262
  %v277 = vpop.permute.xlu0 %276
  %280 = vset.pattern.permute.xlu0 0
  %281 = vperm.xlu0 %280, %v263
  %v282 = vpop.permute.xlu0 %281
  %v284 = vadd.f32 %v256, %v267
  %v285 = vadd.f32 %v257, %v272
  %v286 = vadd.f32 %v258, %v277
  %v287 = vadd.f32 %v259, %v282
  %288 = vst.msk [vmem:[%s7] sm:$0xff] %vm136, %v284
  %289 = vst.msk [vmem:[%s7 + $0x8] sm:$0xff] %vm136, %v285
  %290 = vst.msk [vmem:[%s7 + $0x10] sm:$0xff] %vm136, %v286
  %291 = vst.msk [vmem:[%s7 + $0x18] sm:$0xff] %vm136, %v287
  // Predicated region
  $region30: #{se_conv_bn.1} parent=0 // pred_check
    _
  $region31: #{se_conv_bn.1} parent=0 // pred_check_branch
    %293 = sbr.rel (0) target = $region33
  $region32: #{se_conv_bn.1} parent=0 // pred_region
    _
  $region33: #{se_conv_bn.1} parent=0 // pred_fallthru
    _
  // Predicated region
  $region34: #{se_conv_bn.1} parent=0 // pred_check
    _
  $region35: #{se_conv_bn.1} parent=0 // pred_check_branch
    %295 = sbr.rel (0) target = $region37
  $region36: #{se_conv_bn.1} parent=0 // pred_region
    _
  $region37: #{se_conv_bn.1} parent=0 // pred_fallthru
    _

</llo_original>
